<compile_context>
chip_gen: v5e
topology: v5e:2x2
jax: 0.10.0
libtpu: 0.0.40
codegen_flags: <defaults>
</compile_context>

<pallas_src>
import jax
import jax.numpy as jnp
from jax import lax
from jax.experimental import pallas as pl
from jax.experimental.pallas import tpu as pltpu

INPUT_DIM = 17   # target_only=True -> 17 selected features
HIDDEN = 16
EPS = 1e-5       # nn.BatchNorm1d default eps


def _round_up(x, m):
    return ((x + m - 1) // m) * m


def mlp_kernel(x_ref, w1_ref, p_ref, out_ref):
    x = x_ref[...]                                            # (TILE_B, D)

    # Hidden layer computed transposed: (H, TILE_B) = (H, D) . (TILE_B, D)^T  (MXU).
    h = lax.dot_general(w1_ref[...], x, (((1,), (1,)), ((), ())),
                        preferred_element_type=jnp.float32)   # (H, TILE_B)

    # Packed small params: column 0 = folded (Linear+BN) bias, 1 = w2, 2 = b2.
    p = p_ref[...]                                            # (H, 3)

    # Folded bias + ReLU.  Dropout(p=0.2) is identity at inference.
    # TODO(synk): training-mode dropout (random mask, scale by 1/0.8) not emitted.
    h = jnp.maximum(h + p[:, 0:1], 0.0)                       # (H, TILE_B)

    # Output layer (16 -> 1): VPU multiply + sublane reduction -> lane-dense row.
    y = jnp.sum(h * p[:, 1:2], axis=0, keepdims=True) + p[0:1, 2:3]
    out_ref[...] = y                                          # (1, TILE_B)


def neural_net_forward(x, params, tile_b=None):
    """x: (B, INPUT_DIM) float32 -> (B,) float32  (inference forward pass)."""
    B, D = x.shape
    w1, b1, gamma, beta, rmean, rvar, w2, b2 = params   # PyTorch-native layouts

    # Fold inference BatchNorm1d into the first Linear (affine o affine):
    #   BN(x @ W1^T + b1) = x @ (s[:,None] * W1)^T + ((b1 - mean) * s + beta),
    #   with s = gamma / sqrt(var + eps).
    scale = gamma * lax.rsqrt(rvar + EPS)                 # (H,)
    w1f = w1 * scale[:, None]                             # (H, D)
    b1f = ((b1 - rmean) * scale + beta)[:, None]          # (H, 1)
    w2c = w2.reshape(HIDDEN, 1)                           # (H, 1)   (w2 is (1, H))
    b2c = jnp.full((HIDDEN, 1), b2[0], jnp.float32)       # (H, 1) broadcast of b2
    psmall = jnp.concatenate([b1f, w2c, b2c], axis=1)     # (H, 3) packed slab

    # Batch tile: multiple of 128 (lane-dense output blocks), capped so the
    # double-buffered x tile stays far below any chip's VMEM budget.
    if tile_b is None:
        tile_b = min(2048, _round_up(B, 128))
    tile_b = _round_up(tile_b, 128)
    b_pad = _round_up(B, tile_b)
    if b_pad != B:
        x = jnp.pad(x, ((0, b_pad - B), (0, 0)))          # ragged last tile -> zero pad
    n_tiles = b_pad // tile_b

    cost = pl.CostEstimate(
        flops=2 * b_pad * D * HIDDEN + 4 * b_pad * HIDDEN,
        transcendentals=0,
        bytes_accessed=4 * (b_pad * D + b_pad + HIDDEN * (D + 3)),
    )

    out = pl.pallas_call(
        mlp_kernel,
        out_shape=jax.ShapeDtypeStruct((1, b_pad), jnp.float32),
        grid_spec=pltpu.PrefetchScalarGridSpec(
            num_scalar_prefetch=0,
            grid=(n_tiles,),
            in_specs=[
                pl.BlockSpec((tile_b, D), lambda i: (i, 0)),    # x tile (pipelined)
                pl.BlockSpec((HIDDEN, D), lambda i: (0, 0)),    # folded W1 (pinned)
                pl.BlockSpec((HIDDEN, 3), lambda i: (0, 0)),    # packed b1|w2|b2 (pinned)
            ],
            out_specs=pl.BlockSpec((1, tile_b), lambda i: (0, i)),  # lane-dense row
        ),
        compiler_params=pltpu.CompilerParams(
            dimension_semantics=("parallel",),
            vmem_limit_bytes=32 * 1024 * 1024,
        ),
        cost_estimate=cost,
    )(x, w1f, psmall)
    return out[0, :B]                                      # .squeeze(1) + drop batch padding


def init_params(key, input_dim=INPUT_DIM, hidden=HIDDEN):
    """Deterministic synthetic parameters in PyTorch-native layouts.

    Non-trivial BatchNorm stats so the BN->Linear fold is actually exercised.
    """
    ks = jax.random.split(key, 8)
    bound1 = 1.0 / jnp.sqrt(input_dim)
    w1 = jax.random.uniform(ks[0], (hidden, input_dim), jnp.float32, -bound1, bound1)
    b1 = jax.random.uniform(ks[1], (hidden,), jnp.float32, -bound1, bound1)
    gamma = jax.random.uniform(ks[2], (hidden,), jnp.float32, 0.5, 1.5)
    beta = jax.random.uniform(ks[3], (hidden,), jnp.float32, -0.2, 0.2)
    rmean = jax.random.uniform(ks[4], (hidden,), jnp.float32, -0.2, 0.2)
    rvar = jax.random.uniform(ks[5], (hidden,), jnp.float32, 0.5, 1.5)
    bound2 = 1.0 / jnp.sqrt(hidden)
    w2 = jax.random.uniform(ks[6], (1, hidden), jnp.float32, -bound2, bound2)
    b2 = jax.random.uniform(ks[7], (1,), jnp.float32, -bound2, bound2)
    return (w1, b1, gamma, beta, rmean, rvar, w2, b2)


def _reference_forward(x, params):
    """Plain-JAX reference of the PyTorch module (inference mode, unfolded BN)."""
    w1, b1, gamma, beta, rmean, rvar, w2, b2 = params
    h = x @ w1.T + b1
    h = (h - rmean) * lax.rsqrt(rvar + EPS) * gamma + beta
    h = jnp.maximum(h, 0.0)
    return (h @ w2.T + b2)[:, 0]


if __name__ == "__main__":
    key = jax.random.PRNGKey(0)
    kx, kp, kx2 = jax.random.split(key, 3)
    params = init_params(kp)

    fwd = jax.jit(neural_net_forward)

    # Small batch (exercises padding of a ragged tile).
    B = 8
    x = jax.random.uniform(kx, (B, INPUT_DIM), jnp.float32)   # min-max-normalized-ish inputs
    y = jax.block_until_ready(fwd(x, params))
    assert y.shape == (B,)
    assert jnp.allclose(y, _reference_forward(x, params), atol=1e-4, rtol=1e-4)

    # The training-config batch size (200).
    B2 = 200
    x2 = jax.random.uniform(kx2, (B2, INPUT_DIM), jnp.float32)
    y2 = jax.block_until_ready(fwd(x2, params))
    assert y2.shape == (B2,)
    assert jnp.allclose(y2, _reference_forward(x2, params), atol=1e-4, rtol=1e-4)

    print("KERNEL_OK")
</pallas_src>

<mosaic_0001>
module attributes {stable_mosaic.version = 11 : i64} {
  func.func @mlp_kernel(%arg0: i32, %arg1: memref<128x17xf32, #tpu.memory_space<vmem>>, %arg2: memref<16x17xf32, #tpu.memory_space<vmem>>, %arg3: memref<16x3xf32, #tpu.memory_space<vmem>>, %arg4: memref<1x128xf32, #tpu.memory_space<vmem>>) attributes {dimension_semantics = [#tpu.dimension_semantics<parallel>], iteration_bounds = array<i64: 1>, scalar_prefetch = 0 : i64, scratch_operands = 0 : i64, tpu.core_type = #tpu.core_type<tc>, window_params = [{transform_indices = @transform_0, window_bounds = array<i64: 128, 17>}, {pipeline_mode = #tpu.pipeline_mode<synchronous>, transform_indices = @transform_1, window_bounds = array<i64: 16, 17>}, {pipeline_mode = #tpu.pipeline_mode<synchronous>, transform_indices = @transform_2, window_bounds = array<i64: 16, 3>}, {transform_indices = @transform_3, window_bounds = array<i64: 1, 128>}]} {
    %c0 = arith.constant 0 : index
    %c0_0 = arith.constant 0 : index
    %0 = vector.load %arg1[%c0, %c0_0] : memref<128x17xf32, #tpu.memory_space<vmem>>, vector<128x17xf32>
    %c0_1 = arith.constant 0 : index
    %c0_2 = arith.constant 0 : index
    %1 = vector.load %arg2[%c0_1, %c0_2] : memref<16x17xf32, #tpu.memory_space<vmem>>, vector<16x17xf32>
    %cst = arith.constant dense<0.000000e+00> : vector<16x128xf32>
    %2 = tpu.matmul %1, %0, %cst {dimension_numbers = #tpu.dot_dimension_numbers<[1], [1], [0], [0], [0, 0, 1, 0], [], []>} : vector<16x17xf32>, vector<128x17xf32>, vector<16x128xf32> -> vector<16x128xf32>
    %c0_3 = arith.constant 0 : index
    %c0_4 = arith.constant 0 : index
    %3 = vector.load %arg3[%c0_3, %c0_4] : memref<16x3xf32, #tpu.memory_space<vmem>>, vector<16x3xf32>
    %4 = vector.extract_strided_slice %3 {offsets = [0, 0], sizes = [16, 1], strides = [1, 1]} : vector<16x3xf32> to vector<16x1xf32>
    %5 = vector.broadcast %4 : vector<16x1xf32> to vector<16x128xf32>
    %6 = arith.addf %2, %5 : vector<16x128xf32>
    %cst_5 = arith.constant 0.000000e+00 : f32
    %7 = vector.broadcast %cst_5 : f32 to vector<16x128xf32>
    %8 = arith.maximumf %6, %7 : vector<16x128xf32>
    %9 = vector.extract_strided_slice %3 {offsets = [0, 1], sizes = [16, 1], strides = [1, 1]} : vector<16x3xf32> to vector<16x1xf32>
    %10 = vector.broadcast %9 : vector<16x1xf32> to vector<16x128xf32>
    %11 = arith.mulf %8, %10 : vector<16x128xf32>
    %cst_6 = arith.constant dense<0.000000e+00> : vector<128xf32>
    %12 = vector.multi_reduction <add>, %11, %cst_6 [0] : vector<16x128xf32> to vector<128xf32>
    %13 = vector.shape_cast %12 : vector<128xf32> to vector<1x128xf32>
    %14 = vector.extract_strided_slice %3 {offsets = [0, 2], sizes = [1, 1], strides = [1, 1]} : vector<16x3xf32> to vector<1x1xf32>
    %15 = vector.broadcast %14 : vector<1x1xf32> to vector<1x128xf32>
    %16 = arith.addf %13, %15 : vector<1x128xf32>
    %c0_7 = arith.constant 0 : index
    %c0_8 = arith.constant 0 : index
    %17 = vector.load %arg4[%c0_7, %c0_8] : memref<1x128xf32, #tpu.memory_space<vmem>>, vector<1x128xf32>
    tpu.vector_store %arg4[%c0_7, %c0_8], %16 {strides = array<i32>} : memref<1x128xf32, #tpu.memory_space<vmem>>, vector<1x128xf32>,
    return
  }
  func.func @transform_0(%arg0: i32) -> (i32, i32) {
    %c0_i32 = arith.constant 0 : i32
    %c0_i32_0 = arith.constant 0 : i32
    return %arg0, %c0_i32 : i32, i32
  }
  func.func @transform_1(%arg0: i32) -> (i32, i32) {
    %c0_i32 = arith.constant 0 : i32
    %c0_i32_0 = arith.constant 0 : i32
    %c0_i32_1 = arith.constant 0 : i32
    return %c0_i32, %c0_i32_0 : i32, i32
  }
  func.func @transform_2(%arg0: i32) -> (i32, i32) {
    %c0_i32 = arith.constant 0 : i32
    %c0_i32_0 = arith.constant 0 : i32
    %c0_i32_1 = arith.constant 0 : i32
    return %c0_i32, %c0_i32_0 : i32, i32
  }
  func.func @transform_3(%arg0: i32) -> (i32, i32) {
    %c0_i32 = arith.constant 0 : i32
    %c0_i32_0 = arith.constant 0 : i32
    return %c0_i32, %arg0 : i32, i32
  }
}

</mosaic_0001>

<llo_original>
// kernel: neural_net_forward.1
$region0: #{neural_net_forward.1}
  #allocation0 [shape = 'u32[]', space=smem, size = 0x4, offset = 0x4, fixed_abs, tag = 'smem constant byte address 0x4 - core index']
  #allocation1 [shape = 'u32[72,128]{1,0:T(1,128)}', space=vmem, size = 0x9000, scoped, tag = 'internal scratch']
  %s0 = inlined_call_operand.vmem [shape: f32[128,17], index: 0, kind: input, shape index: {}]
  %s1 = inlined_call_operand.vmem [shape: f32[16,17], index: 1, kind: input, shape index: {}]
  %s2 = inlined_call_operand.vmem [shape: f32[16,3], index: 2, kind: input, shape index: {}]
  %s3 = inlined_call_operand.vmem [shape: f32[1,128], index: 3, kind: output, shape index: {}]
  %s4 = sld [smem:[#allocation0]]
  $region22: #{neural_net_forward.1} parent=0
    _
  %s6 = ssub.s32 1, %s4
  %s7 = scalar_select 0, %s6, %s4
  // Predicated region
  $region2: #{neural_net_forward.1} parent=0 // pred_check
    _
  $region3: #{neural_net_forward.1} parent=0 // pred_check_branch
    %9 = sbr.rel (0) target = $region5
  $region4: #{neural_net_forward.1} parent=0 // pred_region
    _
  $region5: #{neural_net_forward.1} parent=0 // pred_fallthru
    _
  // Predicated region
  $region6: #{neural_net_forward.1} parent=0 // pred_check
    _
  $region7: #{neural_net_forward.1} parent=0 // pred_check_branch
    %11 = sbr.rel (0) target = $region9
  $region8: #{neural_net_forward.1} parent=0 // pred_region
    _
  $region9: #{neural_net_forward.1} parent=0 // pred_fallthru
    _
  // Predicated region
  $region10: #{neural_net_forward.1} parent=0 // pred_check
    _
  $region11: #{neural_net_forward.1} parent=0 // pred_check_branch
    %13 = sbr.rel (0) target = $region13
  $region12: #{neural_net_forward.1} parent=0 // pred_region
    _
  $region13: #{neural_net_forward.1} parent=0 // pred_fallthru
    _
  %v14 = vld [vmem:[%s0] sm:$0xff]
  %v15 = vld [vmem:[%s0 + $0x8] sm:$0xff]
  %v16 = vld [vmem:[%s0 + $0x10] sm:$0xff]
  %v17 = vld [vmem:[%s0 + $0x18] sm:$0xff]
  %v18 = vld [vmem:[%s0 + $0x20] sm:$0xff]
  %v19 = vld [vmem:[%s0 + $0x28] sm:$0xff]
  %v20 = vld [vmem:[%s0 + $0x30] sm:$0xff]
  %v21 = vld [vmem:[%s0 + $0x38] sm:$0xff]
  %v22 = vld [vmem:[%s0 + $0x40] sm:$0xff]
  %v23 = vld [vmem:[%s0 + $0x48] sm:$0xff]
  %v24 = vld [vmem:[%s0 + $0x50] sm:$0xff]
  %v25 = vld [vmem:[%s0 + $0x58] sm:$0xff]
  %v26 = vld [vmem:[%s0 + $0x60] sm:$0xff]
  %v27 = vld [vmem:[%s0 + $0x68] sm:$0xff]
  %v28 = vld [vmem:[%s0 + $0x70] sm:$0xff]
  %v29 = vld [vmem:[%s0 + $0x78] sm:$0xff]
  %v30 = vld [vmem:[%s1] sm:$0xff]
  %v31 = vld [vmem:[%s1 + $0x8] sm:$0xff]
  %v32 = vld [vmem:[%s2] sm:$0xff]
  %v33 = vld [vmem:[%s2 + $0x8] sm:$0xff]
  %35 = vset.pattern.permute.xlu0 0
  %36 = vperm.xlu0 %35, %v32
  %v37 = vpop.permute.xlu0 %36
  %40 = vset.pattern.permute.xlu0 0
  %41 = vperm.xlu0 %40, %v33
  %v42 = vpop.permute.xlu0 %41
  %vm44 = vcmask 138240
  %v46 = vsel %vm44, %v30, 0
  %v49 = vsel %vm44, %v31, 0
  %v52 = vsel %vm44, %v14, 0
  %v55 = vsel %vm44, %v15, 0
  %v58 = vsel %vm44, %v16, 0
  %v61 = vsel %vm44, %v17, 0
  %v64 = vsel %vm44, %v18, 0
  %v67 = vsel %vm44, %v19, 0
  %v70 = vsel %vm44, %v20, 0
  %v73 = vsel %vm44, %v21, 0
  %v76 = vsel %vm44, %v22, 0
  %v79 = vsel %vm44, %v23, 0
  %v82 = vsel %vm44, %v24, 0
  %v85 = vsel %vm44, %v25, 0
  %v88 = vsel %vm44, %v26, 0
  %v91 = vsel %vm44, %v27, 0
  %v94 = vsel %vm44, %v28, 0
  %v97 = vsel %vm44, %v29, 0
  %99 = vmatpush.xpose.msra.mxu0 %v97
  %100 = vmatpush.xpose.msra.mxu0 %v94
  %101 = vmatpush.xpose.msra.mxu0 %v91
  %102 = vmatpush.xpose.msra.mxu0 %v88
  %103 = vmatpush.xpose.msra.mxu0 %v85
  %104 = vmatpush.xpose.msra.mxu0 %v82
  %105 = vmatpush.xpose.msra.mxu0 %v79
  %106 = vmatpush.xpose.msra.mxu0 %v76
  %107 = vmatpush.xpose.msra.mxu0 %v73
  %108 = vmatpush.xpose.msra.mxu0 %v70
  %109 = vmatpush.xpose.msra.mxu0 %v67
  %110 = vmatpush.xpose.msra.mxu0 %v64
  %111 = vmatpush.xpose.msra.mxu0 %v61
  %112 = vmatpush.xpose.msra.mxu0 %v58
  %113 = vmatpush.xpose.msra.mxu0 %v55
  %114 = vmatpush.xpose.msra.mxu0 %v52
  %115 = vmatmul.f32.gmra.mxu0 %v46
  %v116 = vpop.f32.mrf.mxu0
  %v117 = vadd.f32 %v37, %v116
  %118 = vmatmul.f32.gmra.mxu0 %v49
  %v119 = vpop.f32.mrf.mxu0
  %v120 = vadd.f32 %v42, %v119
  %121 = vdwg.mxu0
  %v122 = vmax.f32 %v117, 0.0
  %v123 = vmax.f32 %v120, 0.0
  %124 = vset.pattern.permute.xlu0 1
  %125 = vperm.xlu0 %124, %v32
  %v126 = vpop.permute.xlu0 %125
  %128 = vset.pattern.permute.xlu0 1
  %129 = vperm.xlu0 %128, %v33
  %v130 = vpop.permute.xlu0 %129
  %v132 = vmul.f32 %v122, %v126
  %v133 = vmul.f32 %v123, %v130
  %v134 = vadd.f32 %v132, %v133
  %v135 = vrot.slane %v134, 4
  %v136 = vadd.f32 %v134, %v135
  %v137 = vrot.slane %v136, 2
  %v138 = vadd.f32 %v136, %v137
  %v139 = vrot.slane %v138, 1
  %v140 = vadd.f32 %v138, %v139
  %141 = vset.pattern.permute.xlu0 2
  %142 = vperm.xlu0 %141, %v32
  %v143 = vpop.permute.xlu0 %142
  %v145 = vadd.f32 %v140, %v143
  %146 = vst [vmem:[%s3] sm:$0x1] %v145
  // Predicated region
  $region14: #{neural_net_forward.1} parent=0 // pred_check
    _
  $region15: #{neural_net_forward.1} parent=0 // pred_check_branch
    %148 = sbr.rel (0) target = $region17
  $region16: #{neural_net_forward.1} parent=0 // pred_region
    _
  $region17: #{neural_net_forward.1} parent=0 // pred_fallthru
    _
  // Predicated region
  $region18: #{neural_net_forward.1} parent=0 // pred_check
    _
  $region19: #{neural_net_forward.1} parent=0 // pred_check_branch
    %150 = sbr.rel (0) target = $region21
  $region20: #{neural_net_forward.1} parent=0 // pred_region
    _
  $region21: #{neural_net_forward.1} parent=0 // pred_fallthru
    _

</llo_original>
